<compile_context>
chip_gen: v5e
topology: v5e:2x2
jax: 0.10.0
libtpu: 0.0.40
codegen_flags: <defaults>
</compile_context>

<pallas_src>
import jax
import jax.numpy as jnp
from jax.experimental import pallas as pl
from jax.experimental.pallas import tpu as pltpu


def _round_up(x, m):
    return (x + m - 1) // m * m


def _train_kernel(x_ref, w_ref, b_ref, eps_ref, out_ref):
    # x: (TB, H), w: (H, 2L), b: (1, 2L), eps: (TB, L), out: (TB, 3L) = [z|mean|logvar]
    ml = jnp.dot(x_ref[...], w_ref[...],
                 preferred_element_type=jnp.float32) + b_ref[...]      # (TB, 2L)
    L = ml.shape[-1] // 2
    mean = ml[:, :L]
    logvar = ml[:, L:]
    z = eps_ref[...] * jnp.exp(0.5 * logvar) + mean                    # (TB, L)
    out_ref[:, :L] = z.astype(out_ref.dtype)
    out_ref[:, L:] = ml.astype(out_ref.dtype)


def _eval_kernel(x_ref, w_ref, b_ref, out_ref):
    # out: (TB, 2L) = [mean|logvar]; no eps DMA, no EUP exp, no z.
    ml = jnp.dot(x_ref[...], w_ref[...],
                 preferred_element_type=jnp.float32) + b_ref[...]
    out_ref[...] = ml.astype(out_ref.dtype)


def init_varlambda_params(key, hidden_size, latent_length):
    """Matches the PyTorch init (xavier_uniform_ weights, default nn.Linear bias)
    and fuses the two heads along the lane axis once: w (H, 2L), b (1, 2L)."""
    k_wm, k_bm, k_wl, k_bl = jax.random.split(key, 4)
    wb = jnp.sqrt(6.0 / (hidden_size + latent_length))      # xavier bound
    bb = 1.0 / jnp.sqrt(jnp.float32(hidden_size))            # nn.Linear bias bound
    w_mean = jax.random.uniform(k_wm, (hidden_size, latent_length), jnp.float32, -wb, wb)
    w_logvar = jax.random.uniform(k_wl, (hidden_size, latent_length), jnp.float32, -wb, wb)
    b_mean = jax.random.uniform(k_bm, (1, latent_length), jnp.float32, -bb, bb)
    b_logvar = jax.random.uniform(k_bl, (1, latent_length), jnp.float32, -bb, bb)
    # One-time fusion (init-time, never per-call).
    w_fused = jnp.concatenate([w_mean, w_logvar], axis=1)    # (H, 2L)
    b_fused = jnp.concatenate([b_mean, b_logvar], axis=1)    # (1, 2L)
    return w_fused, b_fused


def var_lambda_forward(cell_output, w_fused, b_fused, eps=None, training=True):
    """cell_output: (B, H); w_fused: (H, 2L); b_fused: (1, 2L); eps: (B, L) if training."""
    B, H = cell_output.shape
    L = w_fused.shape[1] // 2

    # Batch tiling: rows multiple of 8; block <= 512 keeps double-buffered inputs
    # well inside v7x's 64 MiB VMEM; "parallel" lets megacore shard over B.
    TB = min(512, _round_up(B, 8))
    B_pad = _round_up(B, TB)
    x = cell_output if B_pad == B else jnp.pad(cell_output, ((0, B_pad - B), (0, 0)))
    grid = (B_pad // TB,)
    cparams = pltpu.CompilerParams(dimension_semantics=("parallel",))

    if training:
        if eps is None:
            raise ValueError("training=True requires eps of shape (B, L)")
        e = eps if B_pad == B else jnp.pad(eps, ((0, B_pad - B), (0, 0)))
        out = pl.pallas_call(
            _train_kernel,
            out_shape=jax.ShapeDtypeStruct((B_pad, 3 * L), jnp.float32),
            grid_spec=pltpu.PrefetchScalarGridSpec(
                num_scalar_prefetch=0,
                grid=grid,
                in_specs=[
                    pl.BlockSpec((TB, H), lambda i: (i, 0)),        # x rows
                    pl.BlockSpec((H, 2 * L), lambda i: (0, 0)),     # fused weight (resident)
                    pl.BlockSpec((1, 2 * L), lambda i: (0, 0)),     # fused bias (resident)
                    pl.BlockSpec((TB, L), lambda i: (i, 0)),        # eps rows
                ],
                out_specs=pl.BlockSpec((TB, 3 * L), lambda i: (i, 0)),
            ),
            compiler_params=cparams,
        )(x, w_fused, b_fused, e)
        z = out[:B, :L]
        mean = out[:B, L:2 * L]
        logvar = out[:B, 2 * L:]
        return z, mean, logvar

    out = pl.pallas_call(
        _eval_kernel,
        out_shape=jax.ShapeDtypeStruct((B_pad, 2 * L), jnp.float32),
        grid_spec=pltpu.PrefetchScalarGridSpec(
            num_scalar_prefetch=0,
            grid=grid,
            in_specs=[
                pl.BlockSpec((TB, H), lambda i: (i, 0)),
                pl.BlockSpec((H, 2 * L), lambda i: (0, 0)),
                pl.BlockSpec((1, 2 * L), lambda i: (0, 0)),
            ],
            out_specs=pl.BlockSpec((TB, 2 * L), lambda i: (i, 0)),
        ),
        compiler_params=cparams,
    )(x, w_fused, b_fused)
    mean = out[:B, :L]
    logvar = out[:B, L:]
    # PyTorch eval path returns only latent_mean; keep the 3-tuple for interface parity.
    return mean, mean, logvar


if __name__ == "__main__":
    hidden_size = 32
    latent_length = 16
    batch = 8

    key = jax.random.PRNGKey(0)
    k_x, k_params, k_eps = jax.random.split(key, 3)

    cell_output = jax.random.normal(k_x, (batch, hidden_size), jnp.float32)
    w_fused, b_fused = init_varlambda_params(k_params, hidden_size, latent_length)
    # eps generated in plain JAX so the sample is deterministic under PRNGKey(0).
    eps = jax.random.normal(k_eps, (batch, latent_length), jnp.float32)

    z, mean, logvar = var_lambda_forward(cell_output, w_fused, b_fused, eps, training=True)
    mean_eval, _, logvar_eval = var_lambda_forward(cell_output, w_fused, b_fused,
                                                   training=False)
    jax.block_until_ready((z, mean, logvar, mean_eval, logvar_eval))

    # reference check in plain JAX
    ref_ml = cell_output @ w_fused + b_fused
    ref_mean = ref_ml[:, :latent_length]
    ref_logvar = ref_ml[:, latent_length:]
    ref_z = eps * jnp.exp(0.5 * ref_logvar) + ref_mean
    assert jnp.allclose(mean, ref_mean, atol=1e-5)
    assert jnp.allclose(logvar, ref_logvar, atol=1e-5)
    assert jnp.allclose(z, ref_z, atol=1e-5)
    assert jnp.allclose(mean_eval, ref_mean, atol=1e-5)
    assert jnp.allclose(logvar_eval, ref_logvar, atol=1e-5)

    print("KERNEL_OK")
</pallas_src>

<mosaic_0001>
module attributes {stable_mosaic.version = 11 : i64} {
  func.func @_train_kernel(%arg0: i32, %arg1: memref<8x32xf32, #tpu.memory_space<vmem>>, %arg2: memref<32x32xf32, #tpu.memory_space<vmem>>, %arg3: memref<1x32xf32, #tpu.memory_space<vmem>>, %arg4: memref<8x16xf32, #tpu.memory_space<vmem>>, %arg5: memref<8x48xf32, #tpu.memory_space<vmem>>) attributes {dimension_semantics = [#tpu.dimension_semantics<parallel>], iteration_bounds = array<i64: 1>, scalar_prefetch = 0 : i64, scratch_operands = 0 : i64, tpu.core_type = #tpu.core_type<tc>, window_params = [{transform_indices = @transform_0, window_bounds = array<i64: 8, 32>}, {pipeline_mode = #tpu.pipeline_mode<synchronous>, transform_indices = @transform_1, window_bounds = array<i64: 32, 32>}, {pipeline_mode = #tpu.pipeline_mode<synchronous>, transform_indices = @transform_2, window_bounds = array<i64: 1, 32>}, {transform_indices = @transform_3, window_bounds = array<i64: 8, 16>}, {transform_indices = @transform_4, window_bounds = array<i64: 8, 48>}]} {
    %c0 = arith.constant 0 : index
    %c0_0 = arith.constant 0 : index
    %0 = vector.load %arg1[%c0, %c0_0] : memref<8x32xf32, #tpu.memory_space<vmem>>, vector<8x32xf32>
    %c0_1 = arith.constant 0 : index
    %c0_2 = arith.constant 0 : index
    %1 = vector.load %arg2[%c0_1, %c0_2] : memref<32x32xf32, #tpu.memory_space<vmem>>, vector<32x32xf32>
    %cst = arith.constant dense<0.000000e+00> : vector<8x32xf32>
    %2 = tpu.matmul %0, %1, %cst {dimension_numbers = #tpu.dot_dimension_numbers<[1], [0], [0], [1], [0, 0, 1, 1], [], []>} : vector<8x32xf32>, vector<32x32xf32>, vector<8x32xf32> -> vector<8x32xf32>
    %c0_3 = arith.constant 0 : index
    %c0_4 = arith.constant 0 : index
    %3 = vector.load %arg3[%c0_3, %c0_4] : memref<1x32xf32, #tpu.memory_space<vmem>>, vector<1x32xf32>
    %4 = vector.broadcast %3 : vector<1x32xf32> to vector<8x32xf32>
    %5 = arith.addf %2, %4 : vector<8x32xf32>
    %6 = vector.extract_strided_slice %5 {offsets = [0, 0], sizes = [8, 16], strides = [1, 1]} : vector<8x32xf32> to vector<8x16xf32>
    %7 = vector.extract_strided_slice %5 {offsets = [0, 16], sizes = [8, 16], strides = [1, 1]} : vector<8x32xf32> to vector<8x16xf32>
    %c0_5 = arith.constant 0 : index
    %c0_6 = arith.constant 0 : index
    %8 = vector.load %arg4[%c0_5, %c0_6] : memref<8x16xf32, #tpu.memory_space<vmem>>, vector<8x16xf32>
    %cst_7 = arith.constant 5.000000e-01 : f32
    %9 = vector.broadcast %cst_7 : f32 to vector<8x16xf32>
    %10 = arith.mulf %9, %7 : vector<8x16xf32>
    %11 = math.exp %10 : vector<8x16xf32>
    %12 = arith.mulf %8, %11 : vector<8x16xf32>
    %13 = arith.addf %12, %6 : vector<8x16xf32>
    %c0_8 = arith.constant 0 : index
    %c0_9 = arith.constant 0 : index
    %14 = vector.load %arg5[%c0_8, %c0_9] : memref<8x48xf32, #tpu.memory_space<vmem>>, vector<8x16xf32>
    tpu.vector_store %arg5[%c0_8, %c0_9], %13 {strides = array<i32>} : memref<8x48xf32, #tpu.memory_space<vmem>>, vector<8x16xf32>,
    %c0_10 = arith.constant 0 : index
    %c16 = arith.constant 16 : index
    %15 = vector.load %arg5[%c0_10, %c16] : memref<8x48xf32, #tpu.memory_space<vmem>>, vector<8x32xf32>
    tpu.vector_store %arg5[%c0_10, %c16], %5 {strides = array<i32>} : memref<8x48xf32, #tpu.memory_space<vmem>>, vector<8x32xf32>,
    return
  }
  func.func @transform_0(%arg0: i32) -> (i32, i32) {
    %c0_i32 = arith.constant 0 : i32
    %c0_i32_0 = arith.constant 0 : i32
    return %arg0, %c0_i32 : i32, i32
  }
  func.func @transform_1(%arg0: i32) -> (i32, i32) {
    %c0_i32 = arith.constant 0 : i32
    %c0_i32_0 = arith.constant 0 : i32
    %c0_i32_1 = arith.constant 0 : i32
    return %c0_i32, %c0_i32_0 : i32, i32
  }
  func.func @transform_2(%arg0: i32) -> (i32, i32) {
    %c0_i32 = arith.constant 0 : i32
    %c0_i32_0 = arith.constant 0 : i32
    %c0_i32_1 = arith.constant 0 : i32
    return %c0_i32, %c0_i32_0 : i32, i32
  }
  func.func @transform_3(%arg0: i32) -> (i32, i32) {
    %c0_i32 = arith.constant 0 : i32
    %c0_i32_0 = arith.constant 0 : i32
    return %arg0, %c0_i32 : i32, i32
  }
  func.func @transform_4(%arg0: i32) -> (i32, i32) {
    %c0_i32 = arith.constant 0 : i32
    %c0_i32_0 = arith.constant 0 : i32
    return %arg0, %c0_i32 : i32, i32
  }
}

</mosaic_0001>

<llo_original>
// kernel: tpu_custom_call.1
$region0: #{tpu_custom_call.1}
  #allocation0 [shape = 'u32[]', space=smem, size = 0x4, offset = 0x4, fixed_abs, tag = 'smem constant byte address 0x4 - core index']
  #allocation1 [shape = 'u32[72,128]{1,0:T(1,128)}', space=vmem, size = 0x9000, scoped, tag = 'internal scratch']
  %s0 = inlined_call_operand.hbm [shape: f32[8,32], index: 0, kind: input, shape index: {}]
  %s1 = inlined_call_operand.hbm [shape: f32[32,32], index: 1, kind: input, shape index: {}]
  %s2 = inlined_call_operand.vmem [shape: f32[1,32], index: 2, kind: input, shape index: {}]
  %s3 = inlined_call_operand.hbm [shape: f32[8,16], index: 3, kind: input, shape index: {}]
  %s4 = inlined_call_operand.hbm [shape: f32[8,48], index: 4, kind: output, shape index: {}]
  %s5 = sld [smem:[#allocation0]]
  $region38: #{tpu_custom_call.1} parent=0
    _
  %s7 = ssub.s32 1, %s5
  %s8 = scalar_select 0, %s7, %s5
  $region1: #{tpu_custom_call.1} parent=0
    #allocation2 [shape = 'u8[4096]{0}', space=vmem, size = 0x1000, scoped, tag = 'input window, operand 0, single buffered']
    #allocation3 [shape = 's32[1]{0}', space=sflag, size = 0x4, scoped, tag = 'scoped memory for tpu_custom_call.1']
    #allocation4 [shape = 's32[1]{0}', space=sflag, size = 0x4, scoped, tag = 'scoped memory for tpu_custom_call.1']
    #allocation5 [shape = 'u8[16384]{0}', space=vmem, size = 0x4000, scoped, tag = 'input window, operand 1, single buffered']
    #allocation6 [shape = 's32[1]{0}', space=sflag, size = 0x4, scoped, tag = 'scoped memory for tpu_custom_call.1']
    #allocation7 [shape = 'u8[4096]{0}', space=vmem, size = 0x1000, scoped, tag = 'input window, operand 3, single buffered']
    #allocation8 [shape = 'u8[4096]{0}', space=vmem, size = 0x1000, scoped, tag = 'output window, operand 0, single buffered']
    %9 = vsyncpa [#allocation3], 0
    %10 = vsyncpa [#allocation6], 0
    %11 = vsyncpa [#allocation4], 0
    // Predicated region
    $region2: #{tpu_custom_call.1} parent=1 // pred_check
      _
    $region3: #{tpu_custom_call.1} parent=1 // pred_check_branch
      %13 = sbr.rel (0) target = $region5
    $region4: #{tpu_custom_call.1} parent=1 // pred_region
      %15 = vsyncadd [#allocation3], 0
      %s17 = sshll.u32 %s0, 4
      %s18 = int_to_ptr.hbm [resolvable:$true] %s17
      %s19 = sshll.u32 [#allocation2], 4
      %s20 = int_to_ptr.vmem [resolvable:$true] %s19
      %22 = dma.hbm_to_vmem [thread:$0]  %s18, 128, %s20, [#allocation3]
    $region5: #{tpu_custom_call.1} parent=1 // pred_fallthru
      _
    // Predicated region
    $region6: #{tpu_custom_call.1} parent=1 // pred_check
      _
    $region7: #{tpu_custom_call.1} parent=1 // pred_check_branch
      %24 = sbr.rel (0) target = $region9
    $region8: #{tpu_custom_call.1} parent=1 // pred_region
      %26 = vsyncadd [#allocation6], 0
      %s27 = sshll.u32 %s1, 4
      %s28 = int_to_ptr.hbm [resolvable:$true] %s27
      %s29 = sshll.u32 [#allocation5], 4
      %s30 = int_to_ptr.vmem [resolvable:$true] %s29
      %35 = dma.hbm_to_vmem [thread:$0]  %s28, 512, %s30, [#allocation6], 128, 128, 8
    $region9: #{tpu_custom_call.1} parent=1 // pred_fallthru
      _
    // Predicated region
    $region10: #{tpu_custom_call.1} parent=1 // pred_check
      _
    $region11: #{tpu_custom_call.1} parent=1 // pred_check_branch
      %37 = sbr.rel (0) target = $region13
    $region12: #{tpu_custom_call.1} parent=1 // pred_region
      _
    $region13: #{tpu_custom_call.1} parent=1 // pred_fallthru
      _
    // Predicated region
    $region14: #{tpu_custom_call.1} parent=1 // pred_check
      _
    $region15: #{tpu_custom_call.1} parent=1 // pred_check_branch
      %39 = sbr.rel (0) target = $region17
    $region16: #{tpu_custom_call.1} parent=1 // pred_region
      %41 = vsyncadd [#allocation6], 0
      %s43 = sshll.u32 %s3, 4
      %s44 = int_to_ptr.hbm [resolvable:$true] %s43
      %s45 = sshll.u32 [#allocation7], 4
      %s46 = int_to_ptr.vmem [resolvable:$true] %s45
      %48 = dma.hbm_to_vmem [thread:$0]  %s44, 128, %s46, [#allocation6]
    $region17: #{tpu_custom_call.1} parent=1 // pred_fallthru
      _
    // Predicated region
    $region18: #{tpu_custom_call.1} parent=1 // pred_check
      _
    $region19: #{tpu_custom_call.1} parent=1 // pred_check_branch
      %50 = sbr.rel (0) target = $region21
    $region20: #{tpu_custom_call.1} parent=1 // pred_region
      %52 = dma.done [#allocation3], 128
    $region21: #{tpu_custom_call.1} parent=1 // pred_fallthru
      _
    // Predicated region
    $region22: #{tpu_custom_call.1} parent=1 // pred_check
      _
    $region23: #{tpu_custom_call.1} parent=1 // pred_check_branch
      %54 = sbr.rel (0) target = $region25
    $region24: #{tpu_custom_call.1} parent=1 // pred_region
      %56 = dma.done [#allocation6], 512
    $region25: #{tpu_custom_call.1} parent=1 // pred_fallthru
      _
    // Predicated region
    $region26: #{tpu_custom_call.1} parent=1 // pred_check
      _
    $region27: #{tpu_custom_call.1} parent=1 // pred_check_branch
      %58 = sbr.rel (0) target = $region29
    $region28: #{tpu_custom_call.1} parent=1 // pred_region
      %60 = dma.done [#allocation6], 128
    $region29: #{tpu_custom_call.1} parent=1 // pred_fallthru
      _
    %v61 = vld [vmem:[#allocation2] sm:$0xff]
    %v62 = vld [vmem:[#allocation5] sm:$0xff]
    %v63 = vld [vmem:[#allocation5 + $0x8] sm:$0xff]
    %v64 = vld [vmem:[#allocation5 + $0x10] sm:$0xff]
    %v65 = vld [vmem:[#allocation5 + $0x18] sm:$0xff]
    %v66 = vld [vmem:[%s2] sm:$0x1]
    %v68 = vperm.slane %v66, 0
    %vm70 = vcmask 261120
    %v72 = vsel %vm70, %v61, 0
    %74 = vmatpush.msra.mxu0 0.0
    %75 = vmatpush.msra.mxu0 0.0
    %76 = vmatpush.msra.mxu0 0.0
    %77 = vmatpush.msra.mxu0 0.0
    %78 = vmatpush.msra.mxu0 0.0
    %79 = vmatpush.msra.mxu0 0.0
    %80 = vmatpush.msra.mxu0 0.0
    %81 = vmatpush.msra.mxu0 0.0
    %82 = vmatpush.msra.mxu0 0.0
    %83 = vmatpush.msra.mxu0 0.0
    %84 = vmatpush.msra.mxu0 0.0
    %85 = vmatpush.msra.mxu0 0.0
    %86 = vmatpush.msra.mxu0 %v65
    %87 = vmatpush.msra.mxu0 %v64
    %88 = vmatpush.msra.mxu0 %v63
    %89 = vmatpush.msra.mxu0 %v62
    %90 = vmatmul.f32.gmra.mxu0 %v72
    %v91 = vpop.f32.mrf.mxu0
    %v92 = vadd.f32 %v68, %v91
    %93 = vdwg.mxu0
    %v94 = vld [vmem:[#allocation7] sm:$0xff]
    %v95 = vmul.f32 %v92, 0.5
    %v96 = vmul.f32 %v95, 1.442695
    %v97 = vpow.pop %v96
    %99 = vrot.lane.b32.xlu0 %v97, 112
    %v100 = vpop.permute.xlu0 %99
    %v102 = vmul.f32 %v94, %v100
    %v103 = vadd.f32 %v102, %v92
    %vm104 = vcmask 130048
    %105 = vst.msk [vmem:[#allocation8] sm:$0xff] %vm104, %v103
    %107 = vrot.lane.b32.xlu0 %v92, 16
    %v108 = vpop.permute.xlu0 %107
    %vm110 = vcmask 392320
    %111 = vst.msk [vmem:[#allocation8] sm:$0xff] %vm110, %v108
    // Predicated region
    $region30: #{tpu_custom_call.1} parent=1 // pred_check
      _
    $region31: #{tpu_custom_call.1} parent=1 // pred_check_branch
      %113 = sbr.rel (0) target = $region33
    $region32: #{tpu_custom_call.1} parent=1 // pred_region
      %115 = vsyncadd [#allocation4], 0
      %s117 = sshll.u32 [#allocation8], 4
      %s118 = int_to_ptr.vmem [resolvable:$true] %s117
      %s119 = sshll.u32 %s4, 4
      %s120 = int_to_ptr.hbm [resolvable:$true] %s119
      %122 = dma.vmem_to_hbm [thread:$0]  %s118, 128, %s120, [#allocation4]
    $region33: #{tpu_custom_call.1} parent=1 // pred_fallthru
      _
    // Predicated region
    $region34: #{tpu_custom_call.1} parent=1 // pred_check
      _
    $region35: #{tpu_custom_call.1} parent=1 // pred_check_branch
      %124 = sbr.rel (0) target = $region37
    $region36: #{tpu_custom_call.1} parent=1 // pred_region
      %126 = dma.done [#allocation4], 128
    $region37: #{tpu_custom_call.1} parent=1 // pred_fallthru
      _
    %127 = vsyncpa [#allocation3], 1
    %128 = vsyncpa [#allocation6], 1
    %129 = vsyncpa [#allocation4], 1

</llo_original>
